<compile_context>
chip_gen: v5e
topology: v5e:2x2
jax: 0.10.0
libtpu: 0.0.40
codegen_flags: <defaults>
</compile_context>

<pallas_src>
import functools

import jax
import jax.numpy as jnp
from jax.experimental import pallas as pl


# ------------------------- problem sizes (small) -----------------------------
B = 8            # batch
D_IN = 32        # input feature dim
D_POS = 32       # positional feature dim
D_CAT = D_IN + D_POS   # 64, lane-packed encoder input
H_ENC = 128      # encoder hidden width
D_FEAT = 128     # encoder output feature dim
H_DEC = 128      # decoder hidden width
D_OUT = 1        # decoder output (MINE statistic, scalar per sample)

# Row offsets of each segment inside the packed weight slab (all multiples of
# 16 so bf16 sublane packing never straddles a segment boundary).
WE1_OFF = 0                       # (D_CAT,   H_ENC)  rows   0..63
WE2_OFF = WE1_OFF + D_CAT         # (H_ENC,   D_FEAT) rows  64..191
WD1_OFF = WE2_OFF + H_ENC         # (2*D_FEAT,H_DEC)  rows 192..447
WD2_OFF = WD1_OFF + 2 * D_FEAT    # (1,       H_DEC)  row  448
SLAB_ROWS = WD2_OFF + 16          # 464 (row 448 + 15 zero pad rows)


# --------------------------- one-time param packing ---------------------------
def prepare_params(params, weights_dtype=jnp.bfloat16):
    """Pack weights/biases ONCE (init-time); the per-call wrapper does no packing."""
    we1 = jnp.concatenate([params["we1x"], params["we1p"]], axis=0)        # (64, 128)
    wd1 = jnp.concatenate([params["wd1a"], params["wd1b"]], axis=0)        # (256, 128)
    wd2_row = params["wd2"].T                                              # (1, 128)
    wd2_pad = jnp.pad(wd2_row, ((0, SLAB_ROWS - WD2_OFF - 1), (0, 0)))     # (16, 128)
    wslab = jnp.concatenate([we1, params["we2"], wd1, wd2_pad], axis=0)    # (464, 128)
    wslab = wslab.astype(weights_dtype)

    bd2_pad = jnp.pad(params["bd2"], ((0, 0), (0, H_DEC - D_OUT)))         # (1, 128)
    bias = jnp.concatenate(
        [params["be1"], params["be2"], params["bd1"], bd2_pad], axis=0
    ).astype(jnp.float32)                                                  # (4, 128)

    return {"wslab": wslab, "bias": bias}


# ------------------------------ Pallas kernel --------------------------------
def encdec_kernel(in_ref_r, pos_ref_r, in_r, pos_r, wslab_r, bias_r, out_r,
                  *, fuse_decoder_k256: bool):
    f32 = jnp.float32

    # Packed biases (f32): rows [be1, be2, bd1, bd2(lane 0 of row 3)].
    bias = bias_r[...]                         # (4, 128)
    be1 = bias[0:1, :]
    be2 = bias[1:2, :]
    bd1 = bias[2:3, :]
    bd2 = bias[3:4, 0:1]

    # Assemble the (2B, D_CAT) encoder input in-kernel:
    #   rows 0:B  = [in_ref | pos_ref], rows B:2B = [in_ | pos_]
    x_top = jnp.concatenate([in_ref_r[...], pos_ref_r[...]], axis=-1)   # (8, 64)
    x_bot = jnp.concatenate([in_r[...], pos_r[...]], axis=-1)           # (8, 64)
    x = jnp.concatenate([x_top, x_bot], axis=0)                         # (16, 64)

    # Encoder: run ONCE on the batch-stacked input; single K=64 matmul then
    # K=128.  Weight slices are static-offset views of the bf16 slab, cast to
    # f32 on the VPU so the MXU accumulates in f32.
    we1 = wslab_r[WE1_OFF:WE1_OFF + D_CAT, :].astype(f32)               # (64, 128)
    we2 = wslab_r[WE2_OFF:WE2_OFF + H_ENC, :].astype(f32)               # (128, 128)
    h = jnp.maximum(jnp.dot(x, we1, preferred_element_type=f32) + be1, 0.0)
    f = jnp.dot(h, we2, preferred_element_type=f32) + be2               # (16, 128)

    # Split at row B (== 8, an f32 sublane-tile boundary -> free view).
    f_ref = f[:B, :]
    f_smp = f[B:, :]

    # Decoder layer 1.
    if fuse_decoder_k256:
        # v6e/v7x: one K=256 matmul against the pre-concatenated weight.
        wd1 = wslab_r[WD1_OFF:WD1_OFF + 2 * D_FEAT, :].astype(f32)      # (256, 128)
        f_cat = jnp.concatenate([f_ref, f_smp], axis=-1)                # (8, 256)
        g = jnp.dot(f_cat, wd1, preferred_element_type=f32) + bd1
    else:
        # v5e (4x128^2 MXU): two K=128 matmuls, skip the lane concat.
        wd1a = wslab_r[WD1_OFF:WD1_OFF + D_FEAT, :].astype(f32)
        wd1b = wslab_r[WD1_OFF + D_FEAT:WD1_OFF + 2 * D_FEAT, :].astype(f32)
        g = (jnp.dot(f_ref, wd1a, preferred_element_type=f32)
             + jnp.dot(f_smp, wd1b, preferred_element_type=f32) + bd1)
    g = jnp.maximum(g, 0.0)

    # Decoder layer 2 (N=1 column): VPU multiply + XLU lane reduction instead
    # of a single-column MXU matmul.
    wd2 = wslab_r[WD2_OFF:WD2_OFF + 1, :].astype(f32)                   # (1, 128)
    out = jnp.sum(g * wd2, axis=-1, keepdims=True) + bd2                # (8, 1)
    out_r[...] = out.astype(out_r.dtype)


# --------------------------------- wrapper ------------------------------------
def encoder_decoder_validation(in_ref, pos_ref, in_, pos_, prepared,
                               *, fuse_decoder_k256=True):
    """Per-call wrapper: no packing ops, just the single-tile pallas_call."""
    wslab = prepared["wslab"]
    bias = prepared["bias"]
    args = (in_ref, pos_ref, in_, pos_, wslab, bias)

    # All operands are 2-D and single-tile; full-array BlockSpecs, grid=().
    in_specs = [pl.BlockSpec(a.shape, lambda: (0, 0)) for a in args]
    out_spec = pl.BlockSpec((B, D_OUT), lambda: (0, 0))

    flops = 2 * (2 * B * D_CAT * H_ENC        # encoder layer 1 (stacked batch)
                 + 2 * B * H_ENC * D_FEAT     # encoder layer 2 (stacked batch)
                 + B * 2 * D_FEAT * H_DEC     # decoder layer 1
                 + B * H_DEC)                 # decoder layer 2 (VPU reduce)
    bytes_accessed = int(sum(a.size * a.dtype.itemsize for a in args)
                         + B * D_OUT * 4)

    kernel = functools.partial(encdec_kernel, fuse_decoder_k256=fuse_decoder_k256)
    return pl.pallas_call(
        kernel,
        out_shape=jax.ShapeDtypeStruct((B, D_OUT), jnp.float32),
        grid=(),
        in_specs=in_specs,
        out_specs=out_spec,
        cost_estimate=pl.CostEstimate(
            flops=flops, transcendentals=0, bytes_accessed=bytes_accessed),
    )(*args)


def _is_v5e() -> bool:
    try:
        kind = jax.devices()[0].device_kind.lower()
    except Exception:
        return False
    return ("v5e" in kind) or ("v5 lite" in kind) or ("v5lite" in kind)


# --------------------------- pure-JAX reference -------------------------------
def reference(in_ref, pos_ref, in_, pos_, prepared):
    """Reference using the SAME prepared params (bf16-quantized weights,
    f32 math), so it validates the kernel's mixed-precision forward pass."""
    w = prepared["wslab"].astype(jnp.float32)
    b = prepared["bias"]
    we1 = w[WE1_OFF:WE1_OFF + D_CAT]
    we2 = w[WE2_OFF:WE2_OFF + H_ENC]
    wd1 = w[WD1_OFF:WD1_OFF + 2 * D_FEAT]
    wd2 = w[WD2_OFF:WD2_OFF + 1]
    be1, be2, bd1 = b[0:1, :], b[1:2, :], b[2:3, :]
    bd2 = b[3:4, 0:1]

    def encode(x, pos):
        xc = jnp.concatenate([x, pos], axis=-1)
        h = jnp.maximum(xc @ we1 + be1, 0.0)
        return h @ we2 + be2

    f_ref = encode(in_ref, pos_ref)
    f = encode(in_, pos_)
    g = jnp.maximum(jnp.concatenate([f_ref, f], axis=-1) @ wd1 + bd1, 0.0)
    return g @ wd2.T + bd2


# ------------------------------------ main ------------------------------------
if __name__ == "__main__":
    key = jax.random.PRNGKey(0)
    ks = jax.random.split(key, 16)

    def init(k, shape, fan_in):
        return (jax.random.normal(k, shape, jnp.float32)
                / jnp.sqrt(fan_in)).astype(jnp.float32)

    raw_params = {
        "we1x": init(ks[0], (D_IN, H_ENC), D_IN + D_POS),
        "we1p": init(ks[1], (D_POS, H_ENC), D_IN + D_POS),
        "be1":  0.1 * jax.random.normal(ks[10], (1, H_ENC), jnp.float32),
        "we2":  init(ks[2], (H_ENC, D_FEAT), H_ENC),
        "be2":  0.1 * jax.random.normal(ks[11], (1, D_FEAT), jnp.float32),
        "wd1a": init(ks[3], (D_FEAT, H_DEC), 2 * D_FEAT),
        "wd1b": init(ks[4], (D_FEAT, H_DEC), 2 * D_FEAT),
        "bd1":  0.1 * jax.random.normal(ks[12], (1, H_DEC), jnp.float32),
        "wd2":  init(ks[5], (H_DEC, D_OUT), H_DEC),
        "bd2":  0.1 * jax.random.normal(ks[13], (1, D_OUT), jnp.float32),
    }

    # One-time packing (init-time) -- the per-call path below does no packing.
    prepared = prepare_params(raw_params, weights_dtype=jnp.bfloat16)
    prepared = jax.tree_util.tree_map(jax.block_until_ready, prepared)

    in_ref = jax.random.normal(ks[6], (B, D_IN), jnp.float32)
    pos_ref = jax.random.normal(ks[7], (B, D_POS), jnp.float32)
    in_ = jax.random.normal(ks[8], (B, D_IN), jnp.float32)
    pos_ = jax.random.normal(ks[9], (B, D_POS), jnp.float32)

    fuse_k256 = not _is_v5e()   # K=256 fused decoder on v6e/v7x, split on v5e
    run = jax.jit(functools.partial(encoder_decoder_validation,
                                    fuse_decoder_k256=fuse_k256))

    out = run(in_ref, pos_ref, in_, pos_, prepared)
    out = jax.block_until_ready(out)

    ref = reference(in_ref, pos_ref, in_, pos_, prepared)
    assert out.shape == (B, D_OUT)
    assert jnp.allclose(out, ref, atol=1e-4, rtol=1e-4), (out, ref)

    print("KERNEL_OK")
</pallas_src>

<mosaic_0001>
module attributes {stable_mosaic.version = 11 : i64} {
  func.func @encdec_kernel(%arg0: memref<8x32xf32, #tpu.memory_space<vmem>>, %arg1: memref<8x32xf32, #tpu.memory_space<vmem>>, %arg2: memref<8x32xf32, #tpu.memory_space<vmem>>, %arg3: memref<8x32xf32, #tpu.memory_space<vmem>>, %arg4: memref<464x128xbf16, #tpu.memory_space<vmem>>, %arg5: memref<4x128xf32, #tpu.memory_space<vmem>>, %arg6: memref<8x1xf32, #tpu.memory_space<vmem>>) attributes {dimension_semantics = [], scalar_prefetch = 0 : i64, scratch_operands = 0 : i64, tpu.core_type = #tpu.core_type<tc>} {
    %c0 = arith.constant 0 : index
    %c0_0 = arith.constant 0 : index
    %0 = vector.load %arg5[%c0, %c0_0] : memref<4x128xf32, #tpu.memory_space<vmem>>, vector<4x128xf32>
    %1 = vector.extract_strided_slice %0 {offsets = [0, 0], sizes = [1, 128], strides = [1, 1]} : vector<4x128xf32> to vector<1x128xf32>
    %2 = vector.extract_strided_slice %0 {offsets = [1, 0], sizes = [1, 128], strides = [1, 1]} : vector<4x128xf32> to vector<1x128xf32>
    %3 = vector.extract_strided_slice %0 {offsets = [2, 0], sizes = [1, 128], strides = [1, 1]} : vector<4x128xf32> to vector<1x128xf32>
    %4 = vector.extract_strided_slice %0 {offsets = [3, 0], sizes = [1, 1], strides = [1, 1]} : vector<4x128xf32> to vector<1x1xf32>
    %c0_1 = arith.constant 0 : index
    %c0_2 = arith.constant 0 : index
    %5 = vector.load %arg0[%c0_1, %c0_2] : memref<8x32xf32, #tpu.memory_space<vmem>>, vector<8x32xf32>
    %c0_3 = arith.constant 0 : index
    %c0_4 = arith.constant 0 : index
    %6 = vector.load %arg1[%c0_3, %c0_4] : memref<8x32xf32, #tpu.memory_space<vmem>>, vector<8x32xf32>
    %7 = tpu.concatenate %5, %6 in 1 : vector<8x32xf32>, vector<8x32xf32> -> vector<8x64xf32>
    %c0_5 = arith.constant 0 : index
    %c0_6 = arith.constant 0 : index
    %8 = vector.load %arg2[%c0_5, %c0_6] : memref<8x32xf32, #tpu.memory_space<vmem>>, vector<8x32xf32>
    %c0_7 = arith.constant 0 : index
    %c0_8 = arith.constant 0 : index
    %9 = vector.load %arg3[%c0_7, %c0_8] : memref<8x32xf32, #tpu.memory_space<vmem>>, vector<8x32xf32>
    %10 = tpu.concatenate %8, %9 in 1 : vector<8x32xf32>, vector<8x32xf32> -> vector<8x64xf32>
    %11 = tpu.concatenate %7, %10 in 0 : vector<8x64xf32>, vector<8x64xf32> -> vector<16x64xf32>
    %c0_9 = arith.constant 0 : index
    %c0_10 = arith.constant 0 : index
    %12 = vector.load %arg4[%c0_9, %c0_10] : memref<464x128xbf16, #tpu.memory_space<vmem>>, vector<64x128xbf16>
    %13 = arith.extf %12 : vector<64x128xbf16> to vector<64x128xf32>
    %c64 = arith.constant 64 : index
    %c0_11 = arith.constant 0 : index
    %14 = vector.load %arg4[%c64, %c0_11] : memref<464x128xbf16, #tpu.memory_space<vmem>>, vector<128x128xbf16>
    %15 = arith.extf %14 : vector<128x128xbf16> to vector<128x128xf32>
    %cst = arith.constant dense<0.000000e+00> : vector<16x128xf32>
    %16 = tpu.matmul %11, %13, %cst {dimension_numbers = #tpu.dot_dimension_numbers<[1], [0], [0], [1], [0, 0, 1, 1], [], []>} : vector<16x64xf32>, vector<64x128xf32>, vector<16x128xf32> -> vector<16x128xf32>
    %17 = vector.broadcast %1 : vector<1x128xf32> to vector<16x128xf32>
    %18 = arith.addf %16, %17 : vector<16x128xf32>
    %cst_12 = arith.constant 0.000000e+00 : f32
    %19 = vector.broadcast %cst_12 : f32 to vector<16x128xf32>
    %20 = arith.maximumf %18, %19 : vector<16x128xf32>
    %cst_13 = arith.constant dense<0.000000e+00> : vector<16x128xf32>
    %21 = tpu.matmul %20, %15, %cst_13 {dimension_numbers = #tpu.dot_dimension_numbers<[1], [0], [0], [1], [0, 0, 1, 1], [], []>} : vector<16x128xf32>, vector<128x128xf32>, vector<16x128xf32> -> vector<16x128xf32>
    %22 = vector.broadcast %2 : vector<1x128xf32> to vector<16x128xf32>
    %23 = arith.addf %21, %22 : vector<16x128xf32>
    %24 = vector.extract_strided_slice %23 {offsets = [0, 0], sizes = [8, 128], strides = [1, 1]} : vector<16x128xf32> to vector<8x128xf32>
    %25 = vector.extract_strided_slice %23 {offsets = [8, 0], sizes = [8, 128], strides = [1, 1]} : vector<16x128xf32> to vector<8x128xf32>
    %c192 = arith.constant 192 : index
    %c0_14 = arith.constant 0 : index
    %26 = vector.load %arg4[%c192, %c0_14] : memref<464x128xbf16, #tpu.memory_space<vmem>>, vector<256x128xbf16>
    %27 = arith.extf %26 : vector<256x128xbf16> to vector<256x128xf32>
    %28 = tpu.concatenate %24, %25 in 1 : vector<8x128xf32>, vector<8x128xf32> -> vector<8x256xf32>
    %cst_15 = arith.constant dense<0.000000e+00> : vector<8x128xf32>
    %29 = tpu.matmul %28, %27, %cst_15 {dimension_numbers = #tpu.dot_dimension_numbers<[1], [0], [0], [1], [0, 0, 1, 1], [], []>} : vector<8x256xf32>, vector<256x128xf32>, vector<8x128xf32> -> vector<8x128xf32>
    %30 = vector.broadcast %3 : vector<1x128xf32> to vector<8x128xf32>
    %31 = arith.addf %29, %30 : vector<8x128xf32>
    %cst_16 = arith.constant 0.000000e+00 : f32
    %32 = vector.broadcast %cst_16 : f32 to vector<8x128xf32>
    %33 = arith.maximumf %31, %32 : vector<8x128xf32>
    %c448 = arith.constant 448 : index
    %c0_17 = arith.constant 0 : index
    %34 = vector.load %arg4[%c448, %c0_17] : memref<464x128xbf16, #tpu.memory_space<vmem>>, vector<1x128xbf16>
    %35 = arith.extf %34 : vector<1x128xbf16> to vector<1x128xf32>
    %36 = vector.broadcast %35 : vector<1x128xf32> to vector<8x128xf32>
    %37 = arith.mulf %33, %36 : vector<8x128xf32>
    %cst_18 = arith.constant dense<0.000000e+00> : vector<8xf32>
    %38 = vector.multi_reduction <add>, %37, %cst_18 [1] : vector<8x128xf32> to vector<8xf32>
    %39 = vector.shape_cast %38 : vector<8xf32> to vector<8x1xf32>
    %40 = vector.broadcast %4 : vector<1x1xf32> to vector<8x1xf32>
    %41 = arith.addf %39, %40 : vector<8x1xf32>
    %c0_19 = arith.constant 0 : index
    %c0_20 = arith.constant 0 : index
    %42 = vector.load %arg6[%c0_19, %c0_20] : memref<8x1xf32, #tpu.memory_space<vmem>>, vector<8x1xf32>
    tpu.vector_store %arg6[%c0_19, %c0_20], %41 {strides = array<i32>} : memref<8x1xf32, #tpu.memory_space<vmem>>, vector<8x1xf32>,
    return
  }
}

</mosaic_0001>

<llo_original>
// kernel: encoder_decoder_validation.1
$region0: #{encoder_decoder_validation.1}
  #allocation0 [shape = 'u32[]', space=smem, size = 0x4, offset = 0x4, fixed_abs, tag = 'smem constant byte address 0x4 - core index']
  #allocation1 [shape = 'u32[72,128]{1,0:T(1,128)}', space=vmem, size = 0x9000, scoped, tag = 'internal scratch']
  %s0 = inlined_call_operand.hbm [shape: f32[8,32], index: 0, kind: input, shape index: {}]
  %s1 = inlined_call_operand.hbm [shape: f32[8,32], index: 1, kind: input, shape index: {}]
  %s2 = inlined_call_operand.hbm [shape: f32[8,32], index: 2, kind: input, shape index: {}]
  %s3 = inlined_call_operand.hbm [shape: f32[8,32], index: 3, kind: input, shape index: {}]
  %s4 = inlined_call_operand.hbm [shape: bf16[464,128], index: 4, kind: input, shape index: {}]
  %s5 = inlined_call_operand.hbm [shape: f32[4,128], index: 5, kind: input, shape index: {}]
  %s6 = inlined_call_operand.vmem [shape: f32[8,1], index: 6, kind: output, shape index: {}]
  %s7 = sld [smem:[#allocation0]]
  $region58: #{encoder_decoder_validation.1} parent=0
    _
  %s9 = ssub.s32 1, %s7
  %s10 = scalar_select 0, %s9, %s7
  $region1: #{encoder_decoder_validation.1} parent=0
    #allocation2 [shape = 'u8[4096]{0}', space=vmem, size = 0x1000, scoped, tag = 'input window, operand 0, single buffered']
    #allocation3 [shape = 's32[1]{0}', space=sflag, size = 0x4, scoped, tag = 'scoped memory for encoder_decoder_validation.1']
    #allocation4 [shape = 'u8[4096]{0}', space=vmem, size = 0x1000, scoped, tag = 'input window, operand 1, single buffered']
    #allocation5 [shape = 's32[1]{0}', space=sflag, size = 0x4, scoped, tag = 'scoped memory for encoder_decoder_validation.1']
    #allocation6 [shape = 'u8[4096]{0}', space=vmem, size = 0x1000, scoped, tag = 'input window, operand 2, single buffered']
    #allocation7 [shape = 'u8[4096]{0}', space=vmem, size = 0x1000, scoped, tag = 'input window, operand 3, single buffered']
    #allocation8 [shape = 's32[1]{0}', space=sflag, size = 0x4, scoped, tag = 'scoped memory for encoder_decoder_validation.1']
    #allocation9 [shape = 'u8[118784]{0}', space=vmem, size = 0x1d000, scoped, tag = 'input window, operand 4, single buffered']
    #allocation10 [shape = 'u8[2048]{0}', space=vmem, size = 0x800, scoped, tag = 'input window, operand 5, single buffered']
    #allocation11 [shape = 's32[1]{0}', space=sflag, size = 0x4, scoped, tag = 'scoped memory for encoder_decoder_validation.1']
    %11 = vsyncpa [#allocation3], 0
    %12 = vsyncpa [#allocation5], 0
    %13 = vsyncpa [#allocation8], 0
    %14 = vsyncpa [#allocation11], 0
    // Predicated region
    $region2: #{encoder_decoder_validation.1} parent=1 // pred_check
      _
    $region3: #{encoder_decoder_validation.1} parent=1 // pred_check_branch
      %16 = sbr.rel (0) target = $region5
    $region4: #{encoder_decoder_validation.1} parent=1 // pred_region
      %18 = vsyncadd [#allocation3], 0
      %s20 = sshll.u32 %s0, 4
      %s21 = int_to_ptr.hbm [resolvable:$true] %s20
      %s22 = sshll.u32 [#allocation2], 4
      %s23 = int_to_ptr.vmem [resolvable:$true] %s22
      %25 = dma.hbm_to_vmem [thread:$0]  %s21, 128, %s23, [#allocation3]
    $region5: #{encoder_decoder_validation.1} parent=1 // pred_fallthru
      _
    // Predicated region
    $region6: #{encoder_decoder_validation.1} parent=1 // pred_check
      _
    $region7: #{encoder_decoder_validation.1} parent=1 // pred_check_branch
      %27 = sbr.rel (0) target = $region9
    $region8: #{encoder_decoder_validation.1} parent=1 // pred_region
      %29 = vsyncadd [#allocation5], 0
      %s31 = sshll.u32 %s1, 4
      %s32 = int_to_ptr.hbm [resolvable:$true] %s31
      %s33 = sshll.u32 [#allocation4], 4
      %s34 = int_to_ptr.vmem [resolvable:$true] %s33
      %36 = dma.hbm_to_vmem [thread:$0]  %s32, 128, %s34, [#allocation5]
    $region9: #{encoder_decoder_validation.1} parent=1 // pred_fallthru
      _
    // Predicated region
    $region10: #{encoder_decoder_validation.1} parent=1 // pred_check
      _
    $region11: #{encoder_decoder_validation.1} parent=1 // pred_check_branch
      %38 = sbr.rel (0) target = $region13
    $region12: #{encoder_decoder_validation.1} parent=1 // pred_region
      %40 = vsyncadd [#allocation5], 0
      %s42 = sshll.u32 %s2, 4
      %s43 = int_to_ptr.hbm [resolvable:$true] %s42
      %s44 = sshll.u32 [#allocation6], 4
      %s45 = int_to_ptr.vmem [resolvable:$true] %s44
      %47 = dma.hbm_to_vmem [thread:$0]  %s43, 128, %s45, [#allocation5]
    $region13: #{encoder_decoder_validation.1} parent=1 // pred_fallthru
      _
    // Predicated region
    $region14: #{encoder_decoder_validation.1} parent=1 // pred_check
      _
    $region15: #{encoder_decoder_validation.1} parent=1 // pred_check_branch
      %49 = sbr.rel (0) target = $region17
    $region16: #{encoder_decoder_validation.1} parent=1 // pred_region
      %51 = vsyncadd [#allocation8], 0
      %s53 = sshll.u32 %s3, 4
      %s54 = int_to_ptr.hbm [resolvable:$true] %s53
      %s55 = sshll.u32 [#allocation7], 4
      %s56 = int_to_ptr.vmem [resolvable:$true] %s55
      %58 = dma.hbm_to_vmem [thread:$0]  %s54, 128, %s56, [#allocation8]
    $region17: #{encoder_decoder_validation.1} parent=1 // pred_fallthru
      _
    // Predicated region
    $region18: #{encoder_decoder_validation.1} parent=1 // pred_check
      _
    $region19: #{encoder_decoder_validation.1} parent=1 // pred_check_branch
      %60 = sbr.rel (0) target = $region21
    $region20: #{encoder_decoder_validation.1} parent=1 // pred_region
      %62 = vsyncadd [#allocation8], 0
      %s63 = sshll.u32 %s4, 4
      %s64 = int_to_ptr.hbm [resolvable:$true] %s63
      %s65 = sshll.u32 [#allocation9], 4
      %s66 = int_to_ptr.vmem [resolvable:$true] %s65
      %71 = dma.hbm_to_vmem [thread:$0]  %s64, 3712, %s66, [#allocation8], 64, 64, 4
    $region21: #{encoder_decoder_validation.1} parent=1 // pred_fallthru
      _
    // Predicated region
    $region22: #{encoder_decoder_validation.1} parent=1 // pred_check
      _
    $region23: #{encoder_decoder_validation.1} parent=1 // pred_check_branch
      %73 = sbr.rel (0) target = $region25
    $region24: #{encoder_decoder_validation.1} parent=1 // pred_region
      %75 = vsyncadd [#allocation11], 0
      %s77 = sshll.u32 %s5, 4
      %s78 = int_to_ptr.hbm [resolvable:$true] %s77
      %s79 = sshll.u32 [#allocation10], 4
      %s80 = int_to_ptr.vmem [resolvable:$true] %s79
      %82 = dma.hbm_to_vmem [thread:$0]  %s78, 64, %s80, [#allocation11]
    $region25: #{encoder_decoder_validation.1} parent=1 // pred_fallthru
      _
    // Predicated region
    $region26: #{encoder_decoder_validation.1} parent=1 // pred_check
      _
    $region27: #{encoder_decoder_validation.1} parent=1 // pred_check_branch
      %84 = sbr.rel (0) target = $region29
    $region28: #{encoder_decoder_validation.1} parent=1 // pred_region
      %86 = dma.done [#allocation3], 128
    $region29: #{encoder_decoder_validation.1} parent=1 // pred_fallthru
      _
    // Predicated region
    $region30: #{encoder_decoder_validation.1} parent=1 // pred_check
      _
    $region31: #{encoder_decoder_validation.1} parent=1 // pred_check_branch
      %88 = sbr.rel (0) target = $region33
    $region32: #{encoder_decoder_validation.1} parent=1 // pred_region
      %90 = dma.done [#allocation5], 128
    $region33: #{encoder_decoder_validation.1} parent=1 // pred_fallthru
      _
    // Predicated region
    $region34: #{encoder_decoder_validation.1} parent=1 // pred_check
      _
    $region35: #{encoder_decoder_validation.1} parent=1 // pred_check_branch
      %92 = sbr.rel (0) target = $region37
    $region36: #{encoder_decoder_validation.1} parent=1 // pred_region
      %94 = dma.done [#allocation5], 128
    $region37: #{encoder_decoder_validation.1} parent=1 // pred_fallthru
      _
    // Predicated region
    $region38: #{encoder_decoder_validation.1} parent=1 // pred_check
      _
    $region39: #{encoder_decoder_validation.1} parent=1 // pred_check_branch
      %96 = sbr.rel (0) target = $region41
    $region40: #{encoder_decoder_validation.1} parent=1 // pred_region
      %98 = dma.done [#allocation8], 128
    $region41: #{encoder_decoder_validation.1} parent=1 // pred_fallthru
      _
    // Predicated region
    $region42: #{encoder_decoder_validation.1} parent=1 // pred_check
      _
    $region43: #{encoder_decoder_validation.1} parent=1 // pred_check_branch
      %100 = sbr.rel (0) target = $region45
    $region44: #{encoder_decoder_validation.1} parent=1 // pred_region
      %102 = dma.done [#allocation8], 3712
    $region45: #{encoder_decoder_validation.1} parent=1 // pred_fallthru
      _
    // Predicated region
    $region46: #{encoder_decoder_validation.1} parent=1 // pred_check
      _
    $region47: #{encoder_decoder_validation.1} parent=1 // pred_check_branch
      %104 = sbr.rel (0) target = $region49
    $region48: #{encoder_decoder_validation.1} parent=1 // pred_region
      %106 = dma.done [#allocation11], 64
    $region49: #{encoder_decoder_validation.1} parent=1 // pred_fallthru
      _
    %v107 = vld [vmem:[#allocation10] sm:$0xf]
    %v108 = vld [vmem:[#allocation2] sm:$0xff]
    %v109 = vld [vmem:[#allocation4] sm:$0xff]
    %111 = vrot.lane.b32.xlu0 %v109, 32
    %v112 = vpop.permute.xlu0 %111
    %vm114 = vcmask 261120
    %v115 = vsel %vm114, %v108, %v112
    %v116 = vld [vmem:[#allocation6] sm:$0xff]
    %v117 = vld [vmem:[#allocation7] sm:$0xff]
    %119 = vrot.lane.b32.xlu0 %v117, 32
    %v120 = vpop.permute.xlu0 %119
    %v122 = vsel %vm114, %v116, %v120
    %v123 = vld [vmem:[#allocation9] sm:$0xf]
    %v124 = vld [vmem:[#allocation9 + $0x4] sm:$0xf]
    %v125 = vld [vmem:[#allocation9 + $0x8] sm:$0xf]
    %v126 = vld [vmem:[#allocation9 + $0xc] sm:$0xf]
    %v127 = vld [vmem:[#allocation9 + $0x10] sm:$0xf]
    %v128 = vld [vmem:[#allocation9 + $0x14] sm:$0xf]
    %v129 = vld [vmem:[#allocation9 + $0x18] sm:$0xf]
    %v130 = vld [vmem:[#allocation9 + $0x1c] sm:$0xf]
    %v131 = vunpack.c.l.bf16 %v123
    %v132 = vunpack.c.l.bf16 %v124
    %v133 = vunpack.c.l.bf16 %v125
    %v134 = vunpack.c.l.bf16 %v126
    %v135 = vunpack.c.l.bf16 %v127
    %v136 = vunpack.c.l.bf16 %v128
    %v137 = vunpack.c.l.bf16 %v129
    %v138 = vunpack.c.l.bf16 %v130
    %v139 = vld [vmem:[#allocation9 + $0x20] sm:$0xf]
    %v140 = vld [vmem:[#allocation9 + $0x24] sm:$0xf]
    %v141 = vld [vmem:[#allocation9 + $0x28] sm:$0xf]
    %v142 = vld [vmem:[#allocation9 + $0x2c] sm:$0xf]
    %v143 = vld [vmem:[#allocation9 + $0x30] sm:$0xf]
    %v144 = vld [vmem:[#allocation9 + $0x34] sm:$0xf]
    %v145 = vld [vmem:[#allocation9 + $0x38] sm:$0xf]
    %v146 = vld [vmem:[#allocation9 + $0x3c] sm:$0xf]
    %v147 = vld [vmem:[#allocation9 + $0x40] sm:$0xf]
    %v148 = vld [vmem:[#allocation9 + $0x44] sm:$0xf]
    %v149 = vld [vmem:[#allocation9 + $0x48] sm:$0xf]
    %v150 = vld [vmem:[#allocation9 + $0x4c] sm:$0xf]
    %v151 = vld [vmem:[#allocation9 + $0x50] sm:$0xf]
    %v152 = vld [vmem:[#allocation9 + $0x54] sm:$0xf]
    %v153 = vld [vmem:[#allocation9 + $0x58] sm:$0xf]
    %v154 = vld [vmem:[#allocation9 + $0x5c] sm:$0xf]
    %v155 = vunpack.c.l.bf16 %v139
    %v156 = vunpack.c.l.bf16 %v140
    %v157 = vunpack.c.l.bf16 %v141
    %v158 = vunpack.c.l.bf16 %v142
    %v159 = vunpack.c.l.bf16 %v143
    %v160 = vunpack.c.l.bf16 %v144
    %v161 = vunpack.c.l.bf16 %v145
    %v162 = vunpack.c.l.bf16 %v146
    %v163 = vunpack.c.l.bf16 %v147
    %v164 = vunpack.c.l.bf16 %v148
    %v165 = vunpack.c.l.bf16 %v149
    %v166 = vunpack.c.l.bf16 %v150
    %v167 = vunpack.c.l.bf16 %v151
    %v168 = vunpack.c.l.bf16 %v152
    %v169 = vunpack.c.l.bf16 %v153
    %v170 = vunpack.c.l.bf16 %v154
    %v171 = vperm.slane %v107, 0
    %vm172 = vcmask 523264
    %v174 = vsel %vm172, %v115, 0
    %v177 = vsel %vm172, %v122, 0
    %179 = vmatpush.msra.mxu0 0.0
    %180 = vmatpush.msra.mxu0 0.0
    %181 = vmatpush.msra.mxu0 0.0
    %182 = vmatpush.msra.mxu0 0.0
    %183 = vmatpush.msra.mxu0 0.0
    %184 = vmatpush.msra.mxu0 0.0
    %185 = vmatpush.msra.mxu0 0.0
    %186 = vmatpush.msra.mxu0 0.0
    %187 = vmatpush.msra.mxu0 %v138
    %188 = vmatpush.msra.mxu0 %v137
    %189 = vmatpush.msra.mxu0 %v136
    %190 = vmatpush.msra.mxu0 %v135
    %191 = vmatpush.msra.mxu0 %v134
    %192 = vmatpush.msra.mxu0 %v133
    %193 = vmatpush.msra.mxu0 %v132
    %194 = vmatpush.msra.mxu0 %v131
    %195 = vmatmul.f32.gmra.mxu0 %v174
    %v196 = vpop.f32.mrf.mxu0
    %v197 = vadd.f32 %v171, %v196
    %198 = vmatmul.f32.gmra.mxu0 %v177
    %v199 = vpop.f32.mrf.mxu0
    %v200 = vadd.f32 %v171, %v199
    %201 = vdwg.mxu0
    %v202 = vmax.f32 %v197, 0.0
    %v203 = vmax.f32 %v200, 0.0
    %v204 = vperm.slane %v107, 1
    %205 = vmatpush.msra.mxu0 %v170
    %206 = vmatpush.msra.mxu0 %v169
    %207 = vmatpush.msra.mxu0 %v168
    %208 = vmatpush.msra.mxu0 %v167
    %209 = vmatpush.msra.mxu0 %v166
    %210 = vmatpush.msra.mxu0 %v165
    %211 = vmatpush.msra.mxu0 %v164
    %212 = vmatpush.msra.mxu0 %v163
    %213 = vmatpush.msra.mxu0 %v162
    %214 = vmatpush.msra.mxu0 %v161
    %215 = vmatpush.msra.mxu0 %v160
    %216 = vmatpush.msra.mxu0 %v159
    %217 = vmatpush.msra.mxu0 %v158
    %218 = vmatpush.msra.mxu0 %v157
    %219 = vmatpush.msra.mxu0 %v156
    %220 = vmatpush.msra.mxu0 %v155
    %221 = vmatmul.f32.gmra.mxu0 %v202
    %v222 = vpop.f32.mrf.mxu0
    %v223 = vadd.f32 %v204, %v222
    %224 = vmatmul.f32.gmra.mxu0 %v203
    %v225 = vpop.f32.mrf.mxu0
    %v226 = vadd.f32 %v204, %v225
    %227 = vdwg.mxu0
    %v228 = vld [vmem:[#allocation9 + $0x60] sm:$0xf]
    %v229 = vld [vmem:[#allocation9 + $0x64] sm:$0xf]
    %v230 = vld [vmem:[#allocation9 + $0x68] sm:$0xf]
    %v231 = vld [vmem:[#allocation9 + $0x6c] sm:$0xf]
    %v232 = vld [vmem:[#allocation9 + $0x70] sm:$0xf]
    %v233 = vld [vmem:[#allocation9 + $0x74] sm:$0xf]
    %v234 = vld [vmem:[#allocation9 + $0x78] sm:$0xf]
    %v235 = vld [vmem:[#allocation9 + $0x7c] sm:$0xf]
    %v236 = vld [vmem:[#allocation9 + $0x80] sm:$0xf]
    %v237 = vld [vmem:[#allocation9 + $0x84] sm:$0xf]
    %v238 = vld [vmem:[#allocation9 + $0x88] sm:$0xf]
    %v239 = vld [vmem:[#allocation9 + $0x8c] sm:$0xf]
    %v240 = vld [vmem:[#allocation9 + $0x90] sm:$0xf]
    %v241 = vld [vmem:[#allocation9 + $0x94] sm:$0xf]
    %v242 = vld [vmem:[#allocation9 + $0x98] sm:$0xf]
    %v243 = vld [vmem:[#allocation9 + $0x9c] sm:$0xf]
    %v244 = vld [vmem:[#allocation9 + $0xa0] sm:$0xf]
    %v245 = vld [vmem:[#allocation9 + $0xa4] sm:$0xf]
    %v246 = vld [vmem:[#allocation9 + $0xa8] sm:$0xf]
    %v247 = vld [vmem:[#allocation9 + $0xac] sm:$0xf]
    %v248 = vld [vmem:[#allocation9 + $0xb0] sm:$0xf]
    %v249 = vld [vmem:[#allocation9 + $0xb4] sm:$0xf]
    %v250 = vld [vmem:[#allocation9 + $0xb8] sm:$0xf]
    %v251 = vld [vmem:[#allocation9 + $0xbc] sm:$0xf]
    %v252 = vld [vmem:[#allocation9 + $0xc0] sm:$0xf]
    %v253 = vld [vmem:[#allocation9 + $0xc4] sm:$0xf]
    %v254 = vld [vmem:[#allocation9 + $0xc8] sm:$0xf]
    %v255 = vld [vmem:[#allocation9 + $0xcc] sm:$0xf]
    %v256 = vld [vmem:[#allocation9 + $0xd0] sm:$0xf]
    %v257 = vld [vmem:[#allocation9 + $0xd4] sm:$0xf]
    %v258 = vld [vmem:[#allocation9 + $0xd8] sm:$0xf]
    %v259 = vld [vmem:[#allocation9 + $0xdc] sm:$0xf]
    %v260 = vunpack.c.l.bf16 %v228
    %v261 = vunpack.c.l.bf16 %v229
    %v262 = vunpack.c.l.bf16 %v230
    %v263 = vunpack.c.l.bf16 %v231
    %v264 = vunpack.c.l.bf16 %v232
    %v265 = vunpack.c.l.bf16 %v233
    %v266 = vunpack.c.l.bf16 %v234
    %v267 = vunpack.c.l.bf16 %v235
    %v268 = vunpack.c.l.bf16 %v236
    %v269 = vunpack.c.l.bf16 %v237
    %v270 = vunpack.c.l.bf16 %v238
    %v271 = vunpack.c.l.bf16 %v239
    %v272 = vunpack.c.l.bf16 %v240
    %v273 = vunpack.c.l.bf16 %v241
    %v274 = vunpack.c.l.bf16 %v242
    %v275 = vunpack.c.l.bf16 %v243
    %v276 = vunpack.c.l.bf16 %v244
    %v277 = vunpack.c.l.bf16 %v245
    %v278 = vunpack.c.l.bf16 %v246
    %v279 = vunpack.c.l.bf16 %v247
    %v280 = vunpack.c.l.bf16 %v248
    %v281 = vunpack.c.l.bf16 %v249
    %v282 = vunpack.c.l.bf16 %v250
    %v283 = vunpack.c.l.bf16 %v251
    %v284 = vunpack.c.l.bf16 %v252
    %v285 = vunpack.c.l.bf16 %v253
    %v286 = vunpack.c.l.bf16 %v254
    %v287 = vunpack.c.l.bf16 %v255
    %v288 = vunpack.c.l.bf16 %v256
    %v289 = vunpack.c.l.bf16 %v257
    %v290 = vunpack.c.l.bf16 %v258
    %v291 = vunpack.c.l.bf16 %v259
    %v292 = vperm.slane %v107, 2
    %293 = vmatpush.msra.mxu0 %v275
    %294 = vmatpush.msra.mxu0 %v274
    %295 = vmatpush.msra.mxu0 %v273
    %296 = vmatpush.msra.mxu0 %v272
    %297 = vmatpush.msra.mxu0 %v271
    %298 = vmatpush.msra.mxu0 %v270
    %299 = vmatpush.msra.mxu0 %v269
    %300 = vmatpush.msra.mxu0 %v268
    %301 = vmatpush.msra.mxu0 %v267
    %302 = vmatpush.msra.mxu0 %v266
    %303 = vmatpush.msra.mxu0 %v265
    %304 = vmatpush.msra.mxu0 %v264
    %305 = vmatpush.msra.mxu0 %v263
    %306 = vmatpush.msra.mxu0 %v262
    %307 = vmatpush.msra.mxu0 %v261
    %308 = vmatpush.msra.mxu0 %v260
    %309 = vmatmul.f32.gmra.mxu0 %v223
    %v310 = vpop.f32.mrf.mxu0
    %v311 = vadd.f32 %v292, %v310
    %312 = vdwg.mxu0
    %313 = vmatpush.msra.mxu0 %v291
    %314 = vmatpush.msra.mxu0 %v290
    %315 = vmatpush.msra.mxu0 %v289
    %316 = vmatpush.msra.mxu0 %v288
    %317 = vmatpush.msra.mxu0 %v287
    %318 = vmatpush.msra.mxu0 %v286
    %319 = vmatpush.msra.mxu0 %v285
    %320 = vmatpush.msra.mxu0 %v284
    %321 = vmatpush.msra.mxu0 %v283
    %322 = vmatpush.msra.mxu0 %v282
    %323 = vmatpush.msra.mxu0 %v281
    %324 = vmatpush.msra.mxu0 %v280
    %325 = vmatpush.msra.mxu0 %v279
    %326 = vmatpush.msra.mxu0 %v278
    %327 = vmatpush.msra.mxu0 %v277
    %328 = vmatpush.msra.mxu0 %v276
    %329 = vmatmul.f32.gmra.mxu0 %v226
    %v330 = vpop.f32.mrf.mxu0
    %v331 = vadd.f32 %v311, %v330
    %332 = vdwg.mxu0
    %v333 = vmax.f32 %v331, 0.0
    %v334 = vld [vmem:[#allocation9 + $0xe0] sm:$0x1]
    %v335 = vunpack.c.l.bf16 %v334
    %v336 = vperm.slane %v335, 0
    %v337 = vmul.f32 %v333, %v336
    %338 = vadd.xlane.f32.xlu0 %v337
    %v339 = vpop.xlane.xlu0 %338
    %v340 = vperm.slane %v107, 3
    %v341 = vadd.f32 %v339, %v340
    %vm342 = vcmask 7168
    %343 = vst.msk [vmem:[%s6] sm:$0xff] %vm342, %v341
    // Predicated region
    $region50: #{encoder_decoder_validation.1} parent=1 // pred_check
      _
    $region51: #{encoder_decoder_validation.1} parent=1 // pred_check_branch
      %345 = sbr.rel (0) target = $region53
    $region52: #{encoder_decoder_validation.1} parent=1 // pred_region
      _
    $region53: #{encoder_decoder_validation.1} parent=1 // pred_fallthru
      _
    // Predicated region
    $region54: #{encoder_decoder_validation.1} parent=1 // pred_check
      _
    $region55: #{encoder_decoder_validation.1} parent=1 // pred_check_branch
      %347 = sbr.rel (0) target = $region57
    $region56: #{encoder_decoder_validation.1} parent=1 // pred_region
      _
    $region57: #{encoder_decoder_validation.1} parent=1 // pred_fallthru
      _
    %348 = vsyncpa [#allocation3], 1
    %349 = vsyncpa [#allocation5], 1
    %350 = vsyncpa [#allocation8], 1
    %351 = vsyncpa [#allocation11], 1

</llo_original>
